<compile_context>
chip_gen: v5e
topology: v5e:2x2
jax: 0.10.0
libtpu: 0.0.40
codegen_flags: <defaults>
</compile_context>

<pallas_src>
import functools

import jax
import jax.numpy as jnp
from jax import lax
from jax.experimental import pallas as pl
from jax.experimental.pallas import tpu as pltpu


def _moe_allreduce_kernel(eps, Ek,
                          residual_ref,   # (tT, H)
                          w_ref,          # (1, H)
                          scale_ref,      # (Ek, tT, 1)  pre-masked expert scales
                          x_ref,          # (Ek, tT, H)  expert-block slab
                          tok_ref,        # (tT, H)      shared-expert output
                          hid_ref,        # out: (tT, H)
                          res_ref,        # out: (tT, H)
                          acc_ref):       # scratch: (tT, H) f32
    eb = pl.program_id(1)

    @pl.when(eb == 0)
    def _init():
        # Fold shared-expert output + residual into the accumulator up front
        # so finalize only has to do the RMSNorm + stores.
        acc_ref[...] = (tok_ref[...].astype(jnp.float32)
                        + residual_ref[...].astype(jnp.float32))

    # Accumulate Ek experts from this slab (short, statically unrolled loop:
    # only one (tT, H) f32 product is live at a time).
    acc = acc_ref[...]
    for k in range(Ek):
        acc = acc + (x_ref[k].astype(jnp.float32)
                     * scale_ref[k].astype(jnp.float32))
    acc_ref[...] = acc

    @pl.when(eb == pl.num_programs(1) - 1)
    def _finalize():
        out_res = acc_ref[...]
        # RMSNorm
        var = jnp.mean(out_res * out_res, axis=-1, keepdims=True)
        inv = lax.rsqrt(var + eps)
        hid = out_res * inv * w_ref[...].astype(jnp.float32)

        hid_ref[...] = hid.astype(hid_ref.dtype)
        res_ref[...] = out_res.astype(res_ref.dtype)


def _sublane_pack(dtype):
    # f32 -> 8, bf16/f16 -> 16, int8/fp8 -> 32 rows per packed sublane tile.
    return {4: 8, 2: 16, 1: 32}.get(jnp.dtype(dtype).itemsize, 8)


def _vmem_budget_bytes():
    """Generation-aware VMEM budget for the tile chooser."""
    cap = 128 * 1024 * 1024
    try:
        cap = int(pltpu.get_tpu_info().vmem_capacity_bytes)
    except Exception:
        pass
    if cap <= 64 * 1024 * 1024:
        # v7x: 64 MiB per TensorCore; leave headroom for compiler scratch.
        return 40 * 1024 * 1024
    # v5e / v6e: 128 MiB physical.
    return 96 * 1024 * 1024


def _choose_tiles(T, E, H, in_dtype, res_dtype, tok_dtype, out_dtype, w_dtype,
                  budget_bytes):
    """Pick (token_tile, expert_block, per_step_vmem_bytes)."""
    in_b = jnp.dtype(in_dtype).itemsize
    res_b = jnp.dtype(res_dtype).itemsize
    tok_b = jnp.dtype(tok_dtype).itemsize
    out_b = jnp.dtype(out_dtype).itemsize
    w_b = jnp.dtype(w_dtype).itemsize

    # Align the token tile to the coarsest sublane packing among all tensors
    # tiled along the token axis (avoids sublane-masked loads/stores on bf16).
    pack = max(_sublane_pack(d)
               for d in (in_dtype, res_dtype, tok_dtype, out_dtype))

    def per_step(tT, Ek):
        return (2 * Ek * tT * H * in_b          # expert slab (double-buffered)
                + 2 * Ek * tT * 128 * 4         # (Ek,tT,1) scale, lane-padded
                + 2 * tT * H * (res_b + tok_b)  # residual + shared-expert input
                + 2 * 2 * tT * H * out_b        # two outputs
                + 2 * 8 * H * w_b               # norm weight (sublane-padded)
                + tT * H * 4)                   # f32 accumulator scratch

    divisors_T = [d for d in range(1, T + 1) if T % d == 0]

    # Keep token tiles moderate (Ek-blocking is the cheaper way to grow the
    # per-step DMA) and guarantee >= 2 token-grid steps when possible so the
    # "parallel" axis can be sharded across v7x's two TensorCores.
    tile_cap = min(T, 512)
    if any(d <= T // 2 and d % pack == 0 for d in divisors_T):
        tile_cap = min(tile_cap, T // 2)

    def pick(pred):
        cands = [d for d in divisors_T
                 if d <= tile_cap and pred(d) and per_step(d, 1) <= budget_bytes]
        return max(cands) if cands else None

    tT = pick(lambda d: d % pack == 0)
    if tT is None:
        tT = pick(lambda d: d % 8 == 0)
    if tT is None:
        # Full token dim is always a legal block shape (correctness fallback).
        tT = T

    # Grow the expert block to fill the leftover VMEM budget.
    Ek = 1
    for cand in range(1, E + 1):
        if E % cand == 0 and per_step(tT, cand) <= budget_bytes:
            Ek = cand
    return tT, Ek, per_step(tT, Ek)


def moe_allreduce(residual, norm_weight, device_num_experts, scale_input,
                  active_experts_token_input, token_input, eps, *,
                  token_tile=None, expert_block=None, vmem_budget_bytes=None):
    T, H = residual.shape
    E = active_experts_token_input.shape[0]
    in_dtype = active_experts_token_input.dtype
    out_dtype = residual.dtype

    if vmem_budget_bytes is None:
        vmem_budget_bytes = _vmem_budget_bytes()

    tT, Ek, per_step_bytes = _choose_tiles(
        T, E, H, in_dtype, residual.dtype, token_input.dtype, out_dtype,
        norm_weight.dtype, vmem_budget_bytes)
    if token_tile is not None:
        tT = token_tile
    if expert_block is not None:
        Ek = expert_block
    assert T % tT == 0, (T, tT)
    assert E % Ek == 0, (E, Ek)

    # Hoist the expert-activity mask out of the kernel: padded experts
    # (e >= device_num_experts) get zero scale and contribute nothing.
    emask = (jnp.arange(E) < device_num_experts).astype(scale_input.dtype)
    scale3 = (scale_input * emask[:, None]).reshape(E, T, 1)
    w2 = norm_weight.reshape(1, H)

    in_b = jnp.dtype(in_dtype).itemsize
    res_b = jnp.dtype(residual.dtype).itemsize
    tok_b = jnp.dtype(token_input.dtype).itemsize
    out_b = jnp.dtype(out_dtype).itemsize
    w_b = jnp.dtype(norm_weight.dtype).itemsize
    s_b = jnp.dtype(scale_input.dtype).itemsize
    cost = pl.CostEstimate(
        flops=2 * E * T * H + 5 * T * H,
        transcendentals=T,
        bytes_accessed=(E * T * H * in_b            # expert activations (read)
                        + E * T * s_b               # scales
                        + H * w_b                   # norm weight
                        + T * H * (res_b + tok_b)   # residual + token_input
                        + T * H * 2 * out_b),       # two outputs
    )

    # Scoped VMEM: per-step footprint plus a fixed margin (no silent clamping
    # of the headroom); stays well under the per-generation physical capacity
    # because per_step_bytes is bounded by the generation-aware budget.
    vmem_limit = int(max(per_step_bytes + 8 * 1024 * 1024, 32 * 1024 * 1024))

    grid_spec = pltpu.PrefetchScalarGridSpec(
        num_scalar_prefetch=0,
        grid=(T // tT, E // Ek),
        in_specs=[
            pl.BlockSpec((tT, H), lambda i, e: (i, 0)),          # residual
            pl.BlockSpec((1, H), lambda i, e: (0, 0)),           # norm weight
            pl.BlockSpec((Ek, tT, 1), lambda i, e: (e, i, 0)),   # masked scales
            pl.BlockSpec((Ek, tT, H), lambda i, e: (e, i, 0)),   # expert slab
            pl.BlockSpec((tT, H), lambda i, e: (i, 0)),          # shared-expert out
        ],
        out_specs=[
            pl.BlockSpec((tT, H), lambda i, e: (i, 0)),          # hidden_states
            pl.BlockSpec((tT, H), lambda i, e: (i, 0)),          # residual out
        ],
        scratch_shapes=[pltpu.VMEM((tT, H), jnp.float32)],
    )

    hidden, resid_out = pl.pallas_call(
        functools.partial(_moe_allreduce_kernel, eps, Ek),
        grid_spec=grid_spec,
        out_shape=(
            jax.ShapeDtypeStruct((T, H), out_dtype),
            jax.ShapeDtypeStruct((T, H), out_dtype),
        ),
        compiler_params=pltpu.CompilerParams(
            dimension_semantics=("parallel", "arbitrary"),
            vmem_limit_bytes=vmem_limit),
        cost_estimate=cost,
    )(residual, w2, scale3, active_experts_token_input, token_input)
    return hidden, resid_out


def _reference(residual, norm_weight, device_num_experts, scale_input,
               active_experts_token_input, token_input, eps):
    E = active_experts_token_input.shape[0]
    mask = (jnp.arange(E) < device_num_experts).astype(jnp.float32)[:, None]
    scale = scale_input.astype(jnp.float32) * mask
    expert_red = jnp.sum(
        active_experts_token_input.astype(jnp.float32) * scale[..., None], axis=0)
    out_add = expert_red + token_input.astype(jnp.float32)
    out_res = out_add + residual.astype(jnp.float32)
    var = jnp.mean(out_res * out_res, axis=-1, keepdims=True)
    hid = out_res * lax.rsqrt(var + eps) * norm_weight.astype(jnp.float32)
    return hid.astype(residual.dtype), out_res.astype(residual.dtype)


if __name__ == "__main__":
    # Small synthetic shapes: E=4 (padded experts), device_num_experts=3,
    # T=16 tokens, H=128 hidden.
    E, T, H = 4, 16, 128
    eps = 1e-5

    key = jax.random.PRNGKey(0)
    k1, k2, k3, k4, k5 = jax.random.split(key, 5)

    residual = jax.random.normal(k1, (T, H), dtype=jnp.float32)
    norm_weight = jax.random.normal(k2, (H,), dtype=jnp.float32) * 0.1 + 1.0
    scale_input = jax.random.uniform(k3, (E, T), dtype=jnp.float32)
    active_experts_token_input = jax.random.normal(k4, (E, T, H), dtype=jnp.float32)
    token_input = jax.random.normal(k5, (T, H), dtype=jnp.float32)
    device_num_experts = jnp.array(3, dtype=jnp.int32)

    hidden, resid_out = moe_allreduce(
        residual, norm_weight, device_num_experts, scale_input,
        active_experts_token_input, token_input, eps)
    jax.block_until_ready((hidden, resid_out))

    ref_hidden, ref_resid = _reference(
        residual, norm_weight, device_num_experts, scale_input,
        active_experts_token_input, token_input, eps)

    assert jnp.allclose(hidden, ref_hidden, atol=1e-4, rtol=1e-4)
    assert jnp.allclose(resid_out, ref_resid, atol=1e-4, rtol=1e-4)
    print("KERNEL_OK")
</pallas_src>

<mosaic_0001>
module attributes {stable_mosaic.version = 11 : i64} {
  func.func @_moe_allreduce_kernel(%arg0: i32, %arg1: i32, %arg2: memref<8x128xf32, #tpu.memory_space<vmem>>, %arg3: memref<1x128xf32, #tpu.memory_space<vmem>>, %arg4: memref<4x8x1xf32, #tpu.memory_space<vmem>>, %arg5: memref<4x8x128xf32, #tpu.memory_space<vmem>>, %arg6: memref<8x128xf32, #tpu.memory_space<vmem>>, %arg7: memref<8x128xf32, #tpu.memory_space<vmem>>, %arg8: memref<8x128xf32, #tpu.memory_space<vmem>>, %arg9: memref<8x128xf32, #tpu.memory_space<vmem>>) attributes {dimension_semantics = [#tpu.dimension_semantics<parallel>, #tpu.dimension_semantics<arbitrary>], iteration_bounds = array<i64: 2, 1>, scalar_prefetch = 0 : i64, scratch_operands = 1 : i64, tpu.core_type = #tpu.core_type<tc>, window_params = [{transform_indices = @transform_0, window_bounds = array<i64: 8, 128>}, {pipeline_mode = #tpu.pipeline_mode<synchronous>, transform_indices = @transform_1, window_bounds = array<i64: 1, 128>}, {transform_indices = @transform_2, window_bounds = array<i64: 4, 8, 1>}, {transform_indices = @transform_3, window_bounds = array<i64: 4, 8, 128>}, {transform_indices = @transform_4, window_bounds = array<i64: 8, 128>}, {transform_indices = @transform_5, window_bounds = array<i64: 8, 128>}, {transform_indices = @transform_6, window_bounds = array<i64: 8, 128>}]} {
    %c0_i32 = arith.constant 0 : i32
    %0 = arith.cmpi eq, %arg1, %c0_i32 : i32
    %1 = arith.extui %0 : i1 to i32
    %c0_i32_0 = arith.constant 0 : i32
    %2 = arith.cmpi ne, %1, %c0_i32_0 : i32
    scf.if %2 {
      %c0_27 = arith.constant 0 : index
      %c0_28 = arith.constant 0 : index
      %36 = vector.load %arg6[%c0_27, %c0_28] : memref<8x128xf32, #tpu.memory_space<vmem>>, vector<8x128xf32>
      %c0_29 = arith.constant 0 : index
      %c0_30 = arith.constant 0 : index
      %37 = vector.load %arg2[%c0_29, %c0_30] : memref<8x128xf32, #tpu.memory_space<vmem>>, vector<8x128xf32>
      %38 = arith.addf %36, %37 : vector<8x128xf32>
      %c0_31 = arith.constant 0 : index
      %c0_32 = arith.constant 0 : index
      %39 = vector.load %arg9[%c0_31, %c0_32] : memref<8x128xf32, #tpu.memory_space<vmem>>, vector<8x128xf32>
      tpu.vector_store %arg9[%c0_31, %c0_32], %38 {strides = array<i32>} : memref<8x128xf32, #tpu.memory_space<vmem>>, vector<8x128xf32>,
    } else {
    }
    %c0 = arith.constant 0 : index
    %c0_1 = arith.constant 0 : index
    %3 = vector.load %arg9[%c0, %c0_1] : memref<8x128xf32, #tpu.memory_space<vmem>>, vector<8x128xf32>
    %c0_2 = arith.constant 0 : index
    %c0_3 = arith.constant 0 : index
    %c0_4 = arith.constant 0 : index
    %4 = vector.load %arg5[%c0_2, %c0_3, %c0_4] : memref<4x8x128xf32, #tpu.memory_space<vmem>>, vector<1x8x128xf32>
    %5 = vector.shape_cast %4 : vector<1x8x128xf32> to vector<8x128xf32>
    %c0_5 = arith.constant 0 : index
    %c0_6 = arith.constant 0 : index
    %c0_7 = arith.constant 0 : index
    %6 = vector.load %arg4[%c0_5, %c0_6, %c0_7] : memref<4x8x1xf32, #tpu.memory_space<vmem>>, vector<1x8x1xf32>
    %7 = vector.shape_cast %6 : vector<1x8x1xf32> to vector<8x1xf32>
    %8 = vector.broadcast %7 : vector<8x1xf32> to vector<8x128xf32>
    %9 = arith.mulf %5, %8 : vector<8x128xf32>
    %10 = arith.addf %3, %9 : vector<8x128xf32>
    %c1 = arith.constant 1 : index
    %c0_8 = arith.constant 0 : index
    %c0_9 = arith.constant 0 : index
    %11 = vector.load %arg5[%c1, %c0_8, %c0_9] : memref<4x8x128xf32, #tpu.memory_space<vmem>>, vector<1x8x128xf32>
    %12 = vector.shape_cast %11 : vector<1x8x128xf32> to vector<8x128xf32>
    %c1_10 = arith.constant 1 : index
    %c0_11 = arith.constant 0 : index
    %c0_12 = arith.constant 0 : index
    %13 = vector.load %arg4[%c1_10, %c0_11, %c0_12] : memref<4x8x1xf32, #tpu.memory_space<vmem>>, vector<1x8x1xf32>
    %14 = vector.shape_cast %13 : vector<1x8x1xf32> to vector<8x1xf32>
    %15 = vector.broadcast %14 : vector<8x1xf32> to vector<8x128xf32>
    %16 = arith.mulf %12, %15 : vector<8x128xf32>
    %17 = arith.addf %10, %16 : vector<8x128xf32>
    %c2 = arith.constant 2 : index
    %c0_13 = arith.constant 0 : index
    %c0_14 = arith.constant 0 : index
    %18 = vector.load %arg5[%c2, %c0_13, %c0_14] : memref<4x8x128xf32, #tpu.memory_space<vmem>>, vector<1x8x128xf32>
    %19 = vector.shape_cast %18 : vector<1x8x128xf32> to vector<8x128xf32>
    %c2_15 = arith.constant 2 : index
    %c0_16 = arith.constant 0 : index
    %c0_17 = arith.constant 0 : index
    %20 = vector.load %arg4[%c2_15, %c0_16, %c0_17] : memref<4x8x1xf32, #tpu.memory_space<vmem>>, vector<1x8x1xf32>
    %21 = vector.shape_cast %20 : vector<1x8x1xf32> to vector<8x1xf32>
    %22 = vector.broadcast %21 : vector<8x1xf32> to vector<8x128xf32>
    %23 = arith.mulf %19, %22 : vector<8x128xf32>
    %24 = arith.addf %17, %23 : vector<8x128xf32>
    %c3 = arith.constant 3 : index
    %c0_18 = arith.constant 0 : index
    %c0_19 = arith.constant 0 : index
    %25 = vector.load %arg5[%c3, %c0_18, %c0_19] : memref<4x8x128xf32, #tpu.memory_space<vmem>>, vector<1x8x128xf32>
    %26 = vector.shape_cast %25 : vector<1x8x128xf32> to vector<8x128xf32>
    %c3_20 = arith.constant 3 : index
    %c0_21 = arith.constant 0 : index
    %c0_22 = arith.constant 0 : index
    %27 = vector.load %arg4[%c3_20, %c0_21, %c0_22] : memref<4x8x1xf32, #tpu.memory_space<vmem>>, vector<1x8x1xf32>
    %28 = vector.shape_cast %27 : vector<1x8x1xf32> to vector<8x1xf32>
    %29 = vector.broadcast %28 : vector<8x1xf32> to vector<8x128xf32>
    %30 = arith.mulf %26, %29 : vector<8x128xf32>
    %31 = arith.addf %24, %30 : vector<8x128xf32>
    %c0_23 = arith.constant 0 : index
    %c0_24 = arith.constant 0 : index
    %32 = vector.load %arg9[%c0_23, %c0_24] : memref<8x128xf32, #tpu.memory_space<vmem>>, vector<8x128xf32>
    tpu.vector_store %arg9[%c0_23, %c0_24], %31 {strides = array<i32>} : memref<8x128xf32, #tpu.memory_space<vmem>>, vector<8x128xf32>,
    %c0_i32_25 = arith.constant 0 : i32
    %33 = arith.cmpi eq, %arg1, %c0_i32_25 : i32
    %34 = arith.extui %33 : i1 to i32
    %c0_i32_26 = arith.constant 0 : i32
    %35 = arith.cmpi ne, %34, %c0_i32_26 : i32
    scf.if %35 {
      %c0_27 = arith.constant 0 : index
      %c0_28 = arith.constant 0 : index
      %36 = vector.load %arg9[%c0_27, %c0_28] : memref<8x128xf32, #tpu.memory_space<vmem>>, vector<8x128xf32>
      %37 = arith.mulf %36, %36 : vector<8x128xf32>
      %cst = arith.constant dense<0.000000e+00> : vector<8xf32>
      %38 = vector.multi_reduction <add>, %37, %cst [1] : vector<8x128xf32> to vector<8xf32>
      %39 = vector.shape_cast %38 : vector<8xf32> to vector<8x1xf32>
      %cst_29 = arith.constant 1.280000e+02 : f32
      %40 = vector.broadcast %cst_29 : f32 to vector<8x1xf32>
      %41 = arith.divf %39, %40 : vector<8x1xf32>
      %cst_30 = arith.constant 9.99999974E-6 : f32
      %42 = vector.broadcast %cst_30 : f32 to vector<8x1xf32>
      %43 = arith.addf %41, %42 : vector<8x1xf32>
      %44 = math.rsqrt %43 : vector<8x1xf32>
      %45 = vector.broadcast %44 : vector<8x1xf32> to vector<8x128xf32>
      %46 = arith.mulf %36, %45 : vector<8x128xf32>
      %c0_31 = arith.constant 0 : index
      %c0_32 = arith.constant 0 : index
      %47 = vector.load %arg3[%c0_31, %c0_32] : memref<1x128xf32, #tpu.memory_space<vmem>>, vector<1x128xf32>
      %48 = vector.broadcast %47 : vector<1x128xf32> to vector<8x128xf32>
      %49 = arith.mulf %46, %48 : vector<8x128xf32>
      %c0_33 = arith.constant 0 : index
      %c0_34 = arith.constant 0 : index
      %50 = vector.load %arg7[%c0_33, %c0_34] : memref<8x128xf32, #tpu.memory_space<vmem>>, vector<8x128xf32>
      tpu.vector_store %arg7[%c0_33, %c0_34], %49 {strides = array<i32>} : memref<8x128xf32, #tpu.memory_space<vmem>>, vector<8x128xf32>,
      %c0_35 = arith.constant 0 : index
      %c0_36 = arith.constant 0 : index
      %51 = vector.load %arg8[%c0_35, %c0_36] : memref<8x128xf32, #tpu.memory_space<vmem>>, vector<8x128xf32>
      tpu.vector_store %arg8[%c0_35, %c0_36], %36 {strides = array<i32>} : memref<8x128xf32, #tpu.memory_space<vmem>>, vector<8x128xf32>,
    } else {
    }
    return
  }
  func.func @transform_0(%arg0: i32, %arg1: i32) -> (i32, i32) {
    %c0_i32 = arith.constant 0 : i32
    %c0_i32_0 = arith.constant 0 : i32
    return %arg0, %c0_i32 : i32, i32
  }
  func.func @transform_1(%arg0: i32, %arg1: i32) -> (i32, i32) {
    %c0_i32 = arith.constant 0 : i32
    %c0_i32_0 = arith.constant 0 : i32
    %c0_i32_1 = arith.constant 0 : i32
    return %c0_i32, %c0_i32_0 : i32, i32
  }
  func.func @transform_2(%arg0: i32, %arg1: i32) -> (i32, i32, i32) {
    %c0_i32 = arith.constant 0 : i32
    %c0_i32_0 = arith.constant 0 : i32
    return %arg1, %arg0, %c0_i32 : i32, i32, i32
  }
  func.func @transform_3(%arg0: i32, %arg1: i32) -> (i32, i32, i32) {
    %c0_i32 = arith.constant 0 : i32
    %c0_i32_0 = arith.constant 0 : i32
    return %arg1, %arg0, %c0_i32 : i32, i32, i32
  }
  func.func @transform_4(%arg0: i32, %arg1: i32) -> (i32, i32) {
    %c0_i32 = arith.constant 0 : i32
    %c0_i32_0 = arith.constant 0 : i32
    return %arg0, %c0_i32 : i32, i32
  }
  func.func @transform_5(%arg0: i32, %arg1: i32) -> (i32, i32) {
    %c0_i32 = arith.constant 0 : i32
    %c0_i32_0 = arith.constant 0 : i32
    return %arg0, %c0_i32 : i32, i32
  }
  func.func @transform_6(%arg0: i32, %arg1: i32) -> (i32, i32) {
    %c0_i32 = arith.constant 0 : i32
    %c0_i32_0 = arith.constant 0 : i32
    return %arg0, %c0_i32 : i32, i32
  }
}

</mosaic_0001>

<llo_original>
// kernel: tpu_custom_call.1
$region0: #{tpu_custom_call.1}
  #allocation0 [shape = 'u32[]', space=smem, size = 0x4, offset = 0x4, fixed_abs, tag = 'smem constant byte address 0x4 - core index']
  #allocation1 [shape = 'u32[72,128]{1,0:T(1,128)}', space=vmem, size = 0x9000, scoped, tag = 'internal scratch']
  #allocation2 [shape = 'f32[8,128]{1,0:T(8,128)}', space=vmem, size = 0x1000, scoped, tag = 'scratch operand']
  %s0 = inlined_call_operand.hbm [shape: f32[16,128], index: 0, kind: input, shape index: {}]
  %s1 = inlined_call_operand.vmem [shape: f32[1,128], index: 1, kind: input, shape index: {}]
  %s2 = inlined_call_operand.vmem [shape: f32[4,16,1], index: 2, kind: input, shape index: {}]
  %s3 = inlined_call_operand.vmem [shape: f32[4,16,128], index: 3, kind: input, shape index: {}]
  %s4 = inlined_call_operand.hbm [shape: f32[16,128], index: 4, kind: input, shape index: {}]
  %s5 = inlined_call_operand.hbm [shape: f32[16,128], index: 5, kind: output, shape index: {0}]
  %s6 = inlined_call_operand.hbm [shape: f32[16,128], index: 6, kind: output, shape index: {1}]
  %7 = xla_tuple %s5, %s6
  %s8 = sld [smem:[#allocation0]]
  $region153: #{tpu_custom_call.1} parent=0
    _
  %s10 = ssub.s32 1, %s8
  %s11 = scalar_select 0, %s10, %s8
  $region1: #{tpu_custom_call.1} parent=0
    #allocation3 [shape = 'u8[8192]{0}', space=vmem, size = 0x2000, scoped, tag = 'input window, operand 0']
    #allocation4 [shape = 's32[2]{0}', space=sflag, size = 0x8, scoped, tag = 'scoped memory for tpu_custom_call.1']
    #allocation5 [shape = 's32[2]{0}', space=sflag, size = 0x8, scoped, tag = 'scoped memory for tpu_custom_call.1']
    #allocation6 [shape = 'u8[32768]{0}', space=vmem, size = 0x8000, scoped, tag = 'input window, operand 2']
    #allocation7 [shape = 'u8[32768]{0}', space=vmem, size = 0x8000, scoped, tag = 'input window, operand 3']
    #allocation8 [shape = 'u8[8192]{0}', space=vmem, size = 0x2000, scoped, tag = 'input window, operand 4']
    #allocation9 [shape = 's32[2]{0}', space=sflag, size = 0x8, scoped, tag = 'scoped memory for tpu_custom_call.1']
    #allocation10 [shape = 'u8[8192]{0}', space=vmem, size = 0x2000, scoped, tag = 'output window, operand 0']
    #allocation11 [shape = 'u8[8192]{0}', space=vmem, size = 0x2000, scoped, tag = 'output window, operand 1']
    #allocation12 [shape = 's32[2]{0}', space=sflag, size = 0x8, scoped, tag = 'scoped memory for tpu_custom_call.1']
    %12 = vsyncpa [#allocation4], 0
    %s13 = scalar_lea.sflag [#allocation4], 1
    %14 = vsyncpa %s13, 0
    %15 = vsyncpa [#allocation9], 0
    %s16 = scalar_lea.sflag [#allocation9], 1
    %17 = vsyncpa %s16, 0
    %18 = vsyncpa [#allocation5], 0
    %s19 = scalar_lea.sflag [#allocation5], 1
    %20 = vsyncpa %s19, 0
    %21 = vsyncpa [#allocation12], 0
    %s22 = scalar_lea.sflag [#allocation12], 1
    %23 = vsyncpa %s22, 0
    loop: start=0, step=1, limit=4
    $region2: #{tpu_custom_call.1} parent=1 // loop_pre_header
      _
    $region3: #{tpu_custom_call.1} parent=1 // loop_header
      %s25 = sphi 0, %s29
      %p26 = scmp.ge.s32.totalorder %s25, 4
      %s32 = sphi 0, %s44
      %s33 = sphi 0, %s40
      %s34 = sphi 0, %s32
      %s35 = sphi 0, %s33
      %s36 = sphi 0, %s34
      %s37 = sphi 0, %s35
      %s47 = sphi 0, %s49
      %s50 = sphi 0, %s47
      %s51 = sphi 0, %s50
      %s67 = sphi 0, %s51
      %s71 = sphi 0, %s71
      %s73 = sphi 0, %s71
      %s74 = sphi 0, %s73
      %s88 = sphi 0, %s74
      %s96 = sphi 0, %s98
      %s99 = sphi 0, %s96
      %s100 = sphi 0, %s99
      %s116 = sphi 0, %s100
      %s124 = sphi 0, %s126
      %s127 = sphi 0, %s124
      %s128 = sphi 0, %s127
      %s144 = sphi 0, %s128
      %s150 = sphi 0, %s152
      %s153 = sphi 0, %s150
      %s154 = sphi 0, %s153
      %s170 = sphi 0, %s154
      %s176 = sphi 0, %s178
      %s179 = sphi 0, %s176
      %s180 = sphi 0, %s179
      %s196 = sphi 0, %s180
      %s202 = sphi 0, %s204
      %s205 = sphi 0, %s202
      %s206 = sphi 0, %s205
      %s222 = sphi 0, %s206
    $region4: #{tpu_custom_call.1} parent=1 // loop_header_branch
      %28 = sbr.rel (%p26) target = $region8
    $region5: #{tpu_custom_call.1} parent=1 // loop_body
      %s30 = ssub.s32 %s25, 1
      %s31 = ssub.s32 %s25, 2
      %s38 = sadd.s32 1, %s33
      %p39 = scmp.ge.s32.totalorder %s38, 1
      %s40 = scalar_select %p39, 0, %s38
      %s41 = sadd.s32 1, %s32
      %s42 = scalar_select %p39, %s41, %s32
      %p43 = scmp.ge.s32.totalorder %s42, 2
      %s44 = scalar_select %p43, 0, %s42
      %s45 = ssub.s32 %s32, %s44
      %p46 = scmp.eq.s32.totalorder %s45, 0
      %s48 = sadd.s32 %s47, 1
      %s49 = scalar_select %p46, %s47, %s48
      %p52 = pneg %p46
      %p53 = scmp.eq.s32.totalorder %s25, 1
      %p54 = por %p52, %p53
      %p55 = scmp.ne.s32.totalorder %s47, %s50
      %p56 = scmp.eq.s32.totalorder %s25, 0
      %p57 = por %p55, %p56
      %p58 = scmp.ne.s32.totalorder %s47, %s50
      %p59 = scmp.eq.s32.totalorder %s30, 1
      %p60 = por %p58, %p59
      %p61 = scmp.ne.s32.totalorder %s50, %s51
      %p62 = scmp.eq.s32.totalorder %s30, 0
      %p63 = por %p61, %p62
      %p64 = scmp.ne.s32.totalorder %s50, %s51
      %p65 = scmp.eq.s32.totalorder %s31, 1
      %p66 = por %p64, %p65
      %p68 = scmp.ne.s32.totalorder %s51, %s67
      %p69 = scmp.eq.s32.totalorder %s31, 0
      %p70 = por %p68, %p69
      %s72 = sadd.s32 %s71, 1
      %p75 = scmp.eq.s32.totalorder %s25, 1
      %p76 = scmp.ne.s32.totalorder %s71, %s73
      %p77 = scmp.eq.s32.totalorder %s25, 0
      %p78 = por %p76, %p77
      %p79 = scmp.ne.s32.totalorder %s71, %s73
      %p80 = scmp.eq.s32.totalorder %s30, 1
      %p81 = por %p79, %p80
      %p82 = scmp.ne.s32.totalorder %s73, %s74
      %p83 = scmp.eq.s32.totalorder %s30, 0
      %p84 = por %p82, %p83
      %p85 = scmp.ne.s32.totalorder %s73, %s74
      %p86 = scmp.eq.s32.totalorder %s31, 1
      %p87 = por %p85, %p86
      %p89 = scmp.ne.s32.totalorder %s74, %s88
      %p90 = scmp.eq.s32.totalorder %s31, 0
      %p91 = por %p89, %p90
      %s92 = ssub.s32 %s33, %s40
      %s93 = ssub.s32 %s32, %s44
      %s94 = sor.u32 %s92, %s93
      %p95 = scmp.eq.s32.totalorder %s94, 0
      %s97 = sadd.s32 %s96, 1
      %s98 = scalar_select %p95, %s96, %s97
      %p101 = pneg %p95
      %p102 = scmp.eq.s32.totalorder %s25, 1
      %p103 = por %p101, %p102
      %p104 = scmp.ne.s32.totalorder %s96, %s99
      %p105 = scmp.eq.s32.totalorder %s25, 0
      %p106 = por %p104, %p105
      %p107 = scmp.ne.s32.totalorder %s96, %s99
      %p108 = scmp.eq.s32.totalorder %s30, 1
      %p109 = por %p107, %p108
      %p110 = scmp.ne.s32.totalorder %s99, %s100
      %p111 = scmp.eq.s32.totalorder %s30, 0
      %p112 = por %p110, %p111
      %p113 = scmp.ne.s32.totalorder %s99, %s100
      %p114 = scmp.eq.s32.totalorder %s31, 1
      %p115 = por %p113, %p114
      %p117 = scmp.ne.s32.totalorder %s100, %s116
      %p118 = scmp.eq.s32.totalorder %s31, 0
      %p119 = por %p117, %p118
      %s120 = ssub.s32 %s33, %s40
      %s121 = ssub.s32 %s32, %s44
      %s122 = sor.u32 %s120, %s121
      %p123 = scmp.eq.s32.totalorder %s122, 0
      %s125 = sadd.s32 %s124, 1
      %s126 = scalar_select %p123, %s124, %s125
      %p129 = pneg %p123
      %p130 = scmp.eq.s32.totalorder %s25, 1
      %p131 = por %p129, %p130
      %p132 = scmp.ne.s32.totalorder %s124, %s127
      %p133 = scmp.eq.s32.totalorder %s25, 0
      %p134 = por %p132, %p133
      %p135 = scmp.ne.s32.totalorder %s124, %s127
      %p136 = scmp.eq.s32.totalorder %s30, 1
      %p137 = por %p135, %p136
      %p138 = scmp.ne.s32.totalorder %s127, %s128
      %p139 = scmp.eq.s32.totalorder %s30, 0
      %p140 = por %p138, %p139
      %p141 = scmp.ne.s32.totalorder %s127, %s128
      %p142 = scmp.eq.s32.totalorder %s31, 1
      %p143 = por %p141, %p142
      %p145 = scmp.ne.s32.totalorder %s128, %s144
      %p146 = scmp.eq.s32.totalorder %s31, 0
      %p147 = por %p145, %p146
      %s148 = ssub.s32 %s32, %s44
      %p149 = scmp.eq.s32.totalorder %s148, 0
      %s151 = sadd.s32 %s150, 1
      %s152 = scalar_select %p149, %s150, %s151
      %p155 = pneg %p149
      %p156 = scmp.eq.s32.totalorder %s25, 1
      %p157 = por %p155, %p156
      %p158 = scmp.ne.s32.totalorder %s150, %s153
      %p159 = scmp.eq.s32.totalorder %s25, 0
      %p160 = por %p158, %p159
      %p161 = scmp.ne.s32.totalorder %s150, %s153
      %p162 = scmp.eq.s32.totalorder %s30, 1
      %p163 = por %p161, %p162
      %p164 = scmp.ne.s32.totalorder %s153, %s154
      %p165 = scmp.eq.s32.totalorder %s30, 0
      %p166 = por %p164, %p165
      %p167 = scmp.ne.s32.totalorder %s153, %s154
      %p168 = scmp.eq.s32.totalorder %s31, 1
      %p169 = por %p167, %p168
      %p171 = scmp.ne.s32.totalorder %s154, %s170
      %p172 = scmp.eq.s32.totalorder %s31, 0
      %p173 = por %p171, %p172
      %s174 = ssub.s32 %s32, %s44
      %p175 = scmp.eq.s32.totalorder %s174, 0
      %s177 = sadd.s32 %s176, 1
      %s178 = scalar_select %p175, %s176, %s177
      %p181 = pneg %p175
      %p182 = scmp.eq.s32.totalorder %s25, 1
      %p183 = por %p181, %p182
      %p184 = scmp.ne.s32.totalorder %s176, %s179
      %p185 = scmp.eq.s32.totalorder %s25, 0
      %p186 = por %p184, %p185
      %p187 = scmp.ne.s32.totalorder %s176, %s179
      %p188 = scmp.eq.s32.totalorder %s30, 1
      %p189 = por %p187, %p188
      %p190 = scmp.ne.s32.totalorder %s179, %s180
      %p191 = scmp.eq.s32.totalorder %s30, 0
      %p192 = por %p190, %p191
      %p193 = scmp.ne.s32.totalorder %s179, %s180
      %p194 = scmp.eq.s32.totalorder %s31, 1
      %p195 = por %p193, %p194
      %p197 = scmp.ne.s32.totalorder %s180, %s196
      %p198 = scmp.eq.s32.totalorder %s31, 0
      %p199 = por %p197, %p198
      %s200 = ssub.s32 %s32, %s44
      %p201 = scmp.eq.s32.totalorder %s200, 0
      %s203 = sadd.s32 %s202, 1
      %s204 = scalar_select %p201, %s202, %s203
      %p207 = pneg %p201
      %p208 = scmp.eq.s32.totalorder %s25, 1
      %p209 = por %p207, %p208
      %p210 = scmp.ne.s32.totalorder %s202, %s205
      %p211 = scmp.eq.s32.totalorder %s25, 0
      %p212 = por %p210, %p211
      %p213 = scmp.ne.s32.totalorder %s202, %s205
      %p214 = scmp.eq.s32.totalorder %s30, 1
      %p215 = por %p213, %p214
      %p216 = scmp.ne.s32.totalorder %s205, %s206
      %p217 = scmp.eq.s32.totalorder %s30, 0
      %p218 = por %p216, %p217
      %p219 = scmp.ne.s32.totalorder %s205, %s206
      %p220 = scmp.eq.s32.totalorder %s31, 1
      %p221 = por %p219, %p220
      %p223 = scmp.ne.s32.totalorder %s206, %s222
      %p224 = scmp.eq.s32.totalorder %s31, 0
      %p225 = por %p223, %p224
      %p226 = scmp.le.s32.totalorder 1, %s25
      %p227 = scmp.lt.s32.totalorder %s25, 3
      %p228 = pnand %p226, %p227
      %p229 = pneg %p228
      // Predicated region
      $region9: #{tpu_custom_call.1} parent=5 // pred_check
        _
      $region10: #{tpu_custom_call.1} parent=5 // pred_check_branch
        %231 = sbr.rel (%p228) target = $region12
      $region11: #{tpu_custom_call.1} parent=5 // pred_region
        %s232 = ssub.s32 %s25, 1
        // Predicated region
        $region13: #{tpu_custom_call.1} parent=11 // pred_check
          %p233 = pneg %p84
        $region14: #{tpu_custom_call.1} parent=11 // pred_check_branch
          %235 = sbr.rel (%p233) target = $region16
        $region15: #{tpu_custom_call.1} parent=11 // pred_region
          _
        $region16: #{tpu_custom_call.1} parent=11 // pred_fallthru
          _
      $region12: #{tpu_custom_call.1} parent=5 // pred_fallthru
        _
      %p236 = scmp.lt.s32.totalorder %s25, 2
      // Predicated region
      $region17: #{tpu_custom_call.1} parent=5 // pred_check
        %p237 = pneg %p236
      $region18: #{tpu_custom_call.1} parent=5 // pred_check_branch
        %239 = sbr.rel (%p237) target = $region20
      $region19: #{tpu_custom_call.1} parent=5 // pred_region
        // Predicated region
        $region21: #{tpu_custom_call.1} parent=19 // pred_check
          %p240 = pneg %p57
        $region22: #{tpu_custom_call.1} parent=19 // pred_check_branch
          %242 = sbr.rel (%p240) target = $region24
        $region23: #{tpu_custom_call.1} parent=19 // pred_region
          %s243 = sand.u32 %s47, 1
          %s244 = scalar_lea.sflag [#allocation4], %s243
          %s245 = sand.u32 %s47, 1
          %s246 = smul.addr %s245, 8
          %s247 = scalar_lea.vmem [#allocation3], %s246
          %249 = vsyncadd %s244, 0
          %s250 = smul.addr %s32, 8
          %s251 = scalar_lea.hbm %s0, %s250
          %s253 = sshll.u32 %s251, 4
          %s254 = int_to_ptr.hbm [resolvable:$true] %s253
          %s255 = sshll.u32 %s247, 4
          %s256 = int_to_ptr.vmem [resolvable:$true] %s255
          %258 = dma.hbm_to_vmem [thread:$0]  %s254, 128, %s256, %s244
        $region24: #{tpu_custom_call.1} parent=19 // pred_fallthru
          _
        // Predicated region
        $region25: #{tpu_custom_call.1} parent=19 // pred_check
          %p259 = pneg %p106
        $region26: #{tpu_custom_call.1} parent=19 // pred_check_branch
          %261 = sbr.rel (%p259) target = $region28
        $region27: #{tpu_custom_call.1} parent=19 // pred_region
          %s262 = sand.u32 %s96, 1
          %s263 = sand.u32 %s96, 1
          %s264 = smul.addr %s263, 32
          %s265 = scalar_lea.vmem [#allocation6], %s264
          %s266 = smul.u32 4, %s33
          %s267 = smul.addr %s266, 2
          %s268 = sadd.s32 %s32, %s267
          %s269 = smul.addr %s268, 8
          %s270 = scalar_lea.vmem %s2, %s269
          // Predicated region
          $region29: #{tpu_custom_call.1} parent=27 // pred_check
            _
          $region30: #{tpu_custom_call.1} parent=27 // pred_check_branch
            %272 = sbr.rel (0) target = $region32
          $region31: #{tpu_custom_call.1} parent=27 // pred_region
            // Predicated region
            $region33: #{tpu_custom_call.1} parent=31 // pred_check
              _
            $region34: #{tpu_custom_call.1} parent=31 // pred_check_branch
              %274 = sbr.rel (0) target = $region36
            $region35: #{tpu_custom_call.1} parent=31 // pred_region
              // Predicated region
              $region48: #{tpu_custom_call.1} parent=35 // pred_check
                _
              $region49: #{tpu_custom_call.1} parent=35 // pred_check_branch
                %296 = sbr.rel (0) target = $region51
              $region50: #{tpu_custom_call.1} parent=35 // pred_region
                loop: start=0, step=1, limit=1
                $region52: #{tpu_custom_call.1} parent=50 // loop_pre_header
                  _
                $region53: #{tpu_custom_call.1} parent=50 // loop_header
                  %s298 = sphi 0, %s302
                  %p299 = scmp.ge.s32.totalorder %s298, 1
                  %s303 = sphi %s270, %s270
                  %s304 = sphi %s265, %s265
                $region54: #{tpu_custom_call.1} parent=50 // loop_header_branch
                  %301 = sbr.rel (%p299) target = $region58
                $region55: #{tpu_custom_call.1} parent=50 // loop_body
                  %v305 = vld [vmem:[%s303] sm:$0xff]
                  %306 = vst [vmem:[%s304] sm:$0xff] %v305
                  %v307 = vld [vmem:[%s303 + $0x10] sm:$0xff]
                  %308 = vst [vmem:[%s304 + $0x8] sm:$0xff] %v307
                  %v309 = vld [vmem:[%s303 + $0x20] sm:$0xff]
                  %310 = vst [vmem:[%s304 + $0x10] sm:$0xff] %v309
                  %v311 = vld [vmem:[%s303 + $0x30] sm:$0xff]
                  %312 = vst [vmem:[%s304 + $0x18] sm:$0xff] %v311
                $region56: #{tpu_custom_call.1} parent=50 // loop_footer
                  %s302 = sadd.s32 1, %s298
                $region57: #{tpu_custom_call.1} parent=50 // loop_footer_branch
                  %297 = sbr.rel target = $region53
                $region58: #{tpu_custom_call.1} parent=50 // loop_exit
                  _
              $region51: #{tpu_custom_call.1} parent=35 // pred_fallthru
                _
              // Predicated region
              $region59: #{tpu_custom_call.1} parent=35 // pred_check
                _
              $region60: #{tpu_custom_call.1} parent=35 // pred_check_branch
                %314 = sbr.rel target = $region62
              $region61: #{tpu_custom_call.1} parent=35 // pred_region
                _
              $region62: #{tpu_custom_call.1} parent=35 // pred_fallthru
                _
            $region36: #{tpu_custom_call.1} parent=31 // pred_fallthru
              _
            // Predicated region
            $region37: #{tpu_custom_call.1} parent=31 // pred_check
              _
            $region38: #{tpu_custom_call.1} parent=31 // pred_check_branch
              %276 = sbr.rel target = $region40
            $region39: #{tpu_custom_call.1} parent=31 // pred_region
              %s278 = ssub.s32 256, 1
              loop: start=0, step=1, limit=1
              $region41: #{tpu_custom_call.1} parent=39 // loop_pre_header
                _
              $region42: #{tpu_custom_call.1} parent=39 // loop_header
                %s280 = sphi 0, %s284
                %p281 = scmp.ge.s32.totalorder %s280, 1
                %s285 = sphi %s270, %s270
                %s286 = sphi %s265, %s265
              $region43: #{tpu_custom_call.1} parent=39 // loop_header_branch
                %283 = sbr.rel (%p281) target = $region47
              $region44: #{tpu_custom_call.1} parent=39 // loop_body
                %v287 = vld [vmem:[%s285] sm:%s278]
                %288 = vst [vmem:[%s286] sm:%s278] %v287
                %v289 = vld [vmem:[%s285 + $0x10] sm:%s278]
                %290 = vst [vmem:[%s286 + $0x8] sm:%s278] %v289
                %v291 = vld [vmem:[%s285 + $0x20] sm:%s278]
                %292 = vst [vmem:[%s286 + $0x10] sm:%s278] %v291
                %v293 = vld [vmem:[%s285 + $0x30] sm:%s278]
                %294 = vst [vmem:[%s286 + $0x18] sm:%s278] %v293
              $region45: #{tpu_custom_call.1} parent=39 // loop_footer
                %s284 = sadd.s32 1, %s280
              $region46: #{tpu_custom_call.1} parent=39 // loop_footer_branch
                %279 = sbr.rel target = $region42
              $region47: #{tpu_custom_call.1} parent=39 // loop_exit
                _
            $region40: #{tpu_custom_call.1} parent=31 // pred_fallthru
              _
          $region32: #{tpu_custom_call.1} parent=27 // pred_fallthru
            _
          %315 = vnop
        $region28: #{tpu_custom_call.1} parent=19 // pred_fallthru
          _
        // Predicated region
        $region63: #{tpu_custom_call.1} parent=19 // pred_check
          %p316 = pneg %p134
        $region64: #{tpu_custom_call.1} parent=19 // pred_check_branch
          %318 = sbr.rel (%p316) target = $region66
        $region65: #{tpu_custom_call.1} parent=19 // pred_region
          %s319 = sand.u32 %s124, 1
          %s320 = sand.u32 %s124, 1
          %s321 = smul.addr %s320, 32
          %s322 = scalar_lea.vmem [#allocation7], %s321
          %s323 = smul.u32 4, %s33
          %s324 = smul.addr %s323, 2
          %s325 = sadd.s32 %s32, %s324
          %s326 = smul.addr %s325, 8
          %s327 = scalar_lea.vmem %s3, %s326
          // Predicated region
          $region67: #{tpu_custom_call.1} parent=65 // pred_check
            _
          $region68: #{tpu_custom_call.1} parent=65 // pred_check_branch
            %329 = sbr.rel (0) target = $region70
          $region69: #{tpu_custom_call.1} parent=65 // pred_region
            // Predicated region
            $region71: #{tpu_custom_call.1} parent=69 // pred_check
              _
            $region72: #{tpu_custom_call.1} parent=69 // pred_check_branch
              %331 = sbr.rel (0) target = $region74
            $region73: #{tpu_custom_call.1} parent=69 // pred_region
              // Predicated region
              $region86: #{tpu_custom_call.1} parent=73 // pred_check
                _
              $region87: #{tpu_custom_call.1} parent=73 // pred_check_branch
                %353 = sbr.rel (0) target = $region89
              $region88: #{tpu_custom_call.1} parent=73 // pred_region
                loop: start=0, step=1, limit=1
                $region90: #{tpu_custom_call.1} parent=88 // loop_pre_header
                  _
                $region91: #{tpu_custom_call.1} parent=88 // loop_header
                  %s355 = sphi 0, %s359
                  %p356 = scmp.ge.s32.totalorder %s355, 1
                  %s360 = sphi %s327, %s327
                  %s361 = sphi %s322, %s322
                $region92: #{tpu_custom_call.1} parent=88 // loop_header_branch
                  %358 = sbr.rel (%p356) target = $region96
                $region93: #{tpu_custom_call.1} parent=88 // loop_body
                  %v362 = vld [vmem:[%s360] sm:$0xff]
                  %363 = vst [vmem:[%s361] sm:$0xff] %v362
                  %v364 = vld [vmem:[%s360 + $0x10] sm:$0xff]
                  %365 = vst [vmem:[%s361 + $0x8] sm:$0xff] %v364
                  %v366 = vld [vmem:[%s360 + $0x20] sm:$0xff]
                  %367 = vst [vmem:[%s361 + $0x10] sm:$0xff] %v366
                  %v368 = vld [vmem:[%s360 + $0x30] sm:$0xff]
                  %369 = vst [vmem:[%s361 + $0x18] sm:$0xff] %v368
                $region94: #{tpu_custom_call.1} parent=88 // loop_footer
                  %s359 = sadd.s32 1, %s355
                $region95: #{tpu_custom_call.1} parent=88 // loop_footer_branch
                  %354 = sbr.rel target = $region91
                $region96: #{tpu_custom_call.1} parent=88 // loop_exit
                  _
              $region89: #{tpu_custom_call.1} parent=73 // pred_fallthru
                _
              // Predicated region
              $region97: #{tpu_custom_call.1} parent=73 // pred_check
                _
              $region98: #{tpu_custom_call.1} parent=73 // pred_check_branch
                %371 = sbr.rel target = $region100
              $region99: #{tpu_custom_call.1} parent=73 // pred_region
                _
              $region100: #{tpu_custom_call.1} parent=73 // pred_fallthru
                _
            $region74: #{tpu_custom_call.1} parent=69 // pred_fallthru
              _
            // Predicated region
            $region75: #{tpu_custom_call.1} parent=69 // pred_check
              _
            $region76: #{tpu_custom_call.1} parent=69 // pred_check_branch
              %333 = sbr.rel target = $region78
            $region77: #{tpu_custom_call.1} parent=69 // pred_region
              %s335 = ssub.s32 256, 1
              loop: start=0, step=1, limit=1
              $region79: #{tpu_custom_call.1} parent=77 // loop_pre_header
                _
              $region80: #{tpu_custom_call.1} parent=77 // loop_header
                %s337 = sphi 0, %s341
                %p338 = scmp.ge.s32.totalorder %s337, 1
                %s342 = sphi %s327, %s327
                %s343 = sphi %s322, %s322
              $region81: #{tpu_custom_call.1} parent=77 // loop_header_branch
                %340 = sbr.rel (%p338) target = $region85
              $region82: #{tpu_custom_call.1} parent=77 // loop_body
                %v344 = vld [vmem:[%s342] sm:%s335]
                %345 = vst [vmem:[%s343] sm:%s335] %v344
                %v346 = vld [vmem:[%s342 + $0x10] sm:%s335]
                %347 = vst [vmem:[%s343 + $0x8] sm:%s335] %v346
                %v348 = vld [vmem:[%s342 + $0x20] sm:%s335]
                %349 = vst [vmem:[%s343 + $0x10] sm:%s335] %v348
                %v350 = vld [vmem:[%s342 + $0x30] sm:%s335]
                %351 = vst [vmem:[%s343 + $0x18] sm:%s335] %v350
              $region83: #{tpu_custom_call.1} parent=77 // loop_footer
                %s341 = sadd.s32 1, %s337
              $region84: #{tpu_custom_call.1} parent=77 // loop_footer_branch
                %336 = sbr.rel target = $region80
              $region85: #{tpu_custom_call.1} parent=77 // loop_exit
                _
            $region78: #{tpu_custom_call.1} parent=69 // pred_fallthru
              _
          $region70: #{tpu_custom_call.1} parent=65 // pred_fallthru
            _
          %372 = vnop
        $region66: #{tpu_custom_call.1} parent=19 // pred_fallthru
          _
        // Predicated region
        $region101: #{tpu_custom_call.1} parent=19 // pred_check
          %p373 = pneg %p160
        $region102: #{tpu_custom_call.1} parent=19 // pred_check_branch
          %375 = sbr.rel (%p373) target = $region104
        $region103: #{tpu_custom_call.1} parent=19 // pred_region
          %s376 = sand.u32 %s150, 1
          %s377 = scalar_lea.sflag [#allocation9], %s376
          %s378 = sand.u32 %s150, 1
          %s379 = smul.addr %s378, 8
          %s380 = scalar_lea.vmem [#allocation8], %s379
          %382 = vsyncadd %s377, 0
          %s383 = smul.addr %s32, 8
          %s384 = scalar_lea.hbm %s4, %s383
          %s386 = sshll.u32 %s384, 4
          %s387 = int_to_ptr.hbm [resolvable:$true] %s386
          %s388 = sshll.u32 %s380, 4
          %s389 = int_to_ptr.vmem [resolvable:$true] %s388
          %391 = dma.hbm_to_vmem [thread:$0]  %s387, 128, %s389, %s377
        $region104: #{tpu_custom_call.1} parent=19 // pred_fallthru
          _
      $region20: #{tpu_custom_call.1} parent=5 // pred_fallthru
        _
      %p392 = scmp.le.s32.totalorder 1, %s25
      %p393 = scmp.lt.s32.totalorder %s25, 3
      %p394 = pnand %p392, %p393
      %p395 = pneg %p394
      // Predicated region
      $region105: #{tpu_custom_call.1} parent=5 // pred_check
        _
      $region106: #{tpu_custom_call.1} parent=5 // pred_check_branch
        %397 = sbr.rel (%p394) target = $region108
      $region107: #{tpu_custom_call.1} parent=5 // pred_region
        %s398 = ssub.s32 %s25, 1
        %s399 = sand.u32 %s50, 1
        %s400 = scalar_lea.sflag [#allocation4], %s399
        %s401 = sand.u32 %s50, 1
        %s402 = smul.addr %s401, 8
        %s403 = scalar_lea.vmem [#allocation3], %s402
        // Predicated region
        $region109: #{tpu_custom_call.1} parent=107 // pred_check
          %p404 = pneg %p63
        $region110: #{tpu_custom_call.1} parent=107 // pred_check_branch
          %406 = sbr.rel (%p404) target = $region112
        $region111: #{tpu_custom_call.1} parent=107 // pred_region
          %408 = dma.done %s400, 128
        $region112: #{tpu_custom_call.1} parent=107 // pred_fallthru
          _
        %s409 = sand.u32 %s99, 1
        %s410 = sand.u32 %s99, 1
        %s411 = smul.addr %s410, 32
        %s412 = scalar_lea.vmem [#allocation6], %s411
        // Predicated region
        $region113: #{tpu_custom_call.1} parent=107 // pred_check
          %p413 = pneg %p112
        $region114: #{tpu_custom_call.1} parent=107 // pred_check_branch
          %415 = sbr.rel (%p413) target = $region116
        $region115: #{tpu_custom_call.1} parent=107 // pred_region
          _
        $region116: #{tpu_custom_call.1} parent=107 // pred_fallthru
          _
        %s416 = sand.u32 %s127, 1
        %s417 = sand.u32 %s127, 1
        %s418 = smul.addr %s417, 32
        %s419 = scalar_lea.vmem [#allocation7], %s418
        // Predicated region
        $region117: #{tpu_custom_call.1} parent=107 // pred_check
          %p420 = pneg %p140
        $region118: #{tpu_custom_call.1} parent=107 // pred_check_branch
          %422 = sbr.rel (%p420) target = $region120
        $region119: #{tpu_custom_call.1} parent=107 // pred_region
          _
        $region120: #{tpu_custom_call.1} parent=107 // pred_fallthru
          _
        %s423 = sand.u32 %s153, 1
        %s424 = scalar_lea.sflag [#allocation9], %s423
        %s425 = sand.u32 %s153, 1
        %s426 = smul.addr %s425, 8
        %s427 = scalar_lea.vmem [#allocation8], %s426
        // Predicated region
        $region121: #{tpu_custom_call.1} parent=107 // pred_check
          %p428 = pneg %p166
        $region122: #{tpu_custom_call.1} parent=107 // pred_check_branch
          %430 = sbr.rel (%p428) target = $region124
        $region123: #{tpu_custom_call.1} parent=107 // pred_region
          %432 = dma.done %s424, 128
        $region124: #{tpu_custom_call.1} parent=107 // pred_fallthru
          _
        %s433 = sand.u32 %s50, 1
        %s434 = scalar_lea.sflag [#allocation4], %s433
        %s435 = sand.u32 %s50, 1
        %s436 = smul.addr %s435, 8
        %s437 = scalar_lea.vmem [#allocation3], %s436
        %p438 = pneg %p63
        %p439 = pneg %p60
        %p440 = pneg %p84
        %p441 = pneg %p81
        %s442 = sand.u32 %s99, 1
        %s443 = sand.u32 %s99, 1
        %s444 = smul.addr %s443, 32
        %s445 = scalar_lea.vmem [#allocation6], %s444
        %p446 = pneg %p112
        %p447 = pneg %p109
        %s448 = sand.u32 %s127, 1
        %s449 = sand.u32 %s127, 1
        %s450 = smul.addr %s449, 32
        %s451 = scalar_lea.vmem [#allocation7], %s450
        %p452 = pneg %p140
        %p453 = pneg %p137
        %s454 = sand.u32 %s153, 1
        %s455 = scalar_lea.sflag [#allocation9], %s454
        %s456 = sand.u32 %s153, 1
        %s457 = smul.addr %s456, 8
        %s458 = scalar_lea.vmem [#allocation8], %s457
        %p459 = pneg %p166
        %p460 = pneg %p163
        %p461 = pneg %p192
        %p462 = pneg %p189
        %s463 = sand.u32 %s179, 1
        %s464 = scalar_lea.sflag [#allocation5], %s463
        %s465 = sand.u32 %s179, 1
        %s466 = smul.addr %s465, 8
        %s467 = scalar_lea.vmem [#allocation10], %s466
        %p468 = pneg %p218
        %p469 = pneg %p215
        %s470 = sand.u32 %s205, 1
        %s471 = scalar_lea.sflag [#allocation12], %s470
        %s472 = sand.u32 %s205, 1
        %s473 = smul.addr %s472, 8
        %s474 = scalar_lea.vmem [#allocation11], %s473
        %s475 = smul.u32 4, %s35
        %s476 = smul.u32 4, %s35
        %p477 = scmp.eq.s32.totalorder %s35, 0
        // Predicated region
        $region125: #{tpu_custom_call.1} parent=107 // pred_check
          %p478 = pneg %p477
        $region126: #{tpu_custom_call.1} parent=107 // pred_check_branch
          %480 = sbr.rel (%p478) target = $region128
        $region127: #{tpu_custom_call.1} parent=107 // pred_region
          %v481 = vld [vmem:[%s427] sm:$0xff]
          %v482 = vld [vmem:[%s403] sm:$0xff]
          %v483 = vadd.f32 %v481, %v482
          %484 = vst [vmem:[#allocation2] sm:$0xff] %v483
        $region128: #{tpu_custom_call.1} parent=107 // pred_fallthru
          _
        %v485 = vld [vmem:[#allocation2] sm:$0xff]
        %v486 = vld [vmem:[%s419] sm:$0xff]
        %v487 = vld [vmem:[%s412] sm:$0xff]
        %489 = vset.pattern.permute.xlu0 0
        %490 = vperm.xlu0 %489, %v487
        %v491 = vpop.permute.xlu0 %490
        %v493 = vmul.f32 %v486, %v491
        %v494 = vadd.f32 %v485, %v493
        %s495 = scalar_lea.vmem %s419, 8 [#allocation7]
        %v496 = vld [vmem:[%s495] sm:$0xff]
        %s497 = scalar_lea.vmem %s412, 8 [#allocation6]
        %v498 = vld [vmem:[%s497] sm:$0xff]
        %500 = vset.pattern.permute.xlu0 0
        %501 = vperm.xlu0 %500, %v498
        %v502 = vpop.permute.xlu0 %501
        %v504 = vmul.f32 %v496, %v502
        %v505 = vadd.f32 %v494, %v504
        %s506 = scalar_lea.vmem %s419, 16 [#allocation7]
        %v507 = vld [vmem:[%s506] sm:$0xff]
        %s508 = scalar_lea.vmem %s412, 16 [#allocation6]
        %v509 = vld [vmem:[%s508] sm:$0xff]
        %511 = vset.pattern.permute.xlu0 0
        %512 = vperm.xlu0 %511, %v509
        %v513 = vpop.permute.xlu0 %512
        %v515 = vmul.f32 %v507, %v513
        %v516 = vadd.f32 %v505, %v515
        %s517 = scalar_lea.vmem %s419, 24 [#allocation7]
        %v518 = vld [vmem:[%s517] sm:$0xff]
        %s519 = scalar_lea.vmem %s412, 24 [#allocation6]
        %v520 = vld [vmem:[%s519] sm:$0xff]
        %522 = vset.pattern.permute.xlu0 0
        %523 = vperm.xlu0 %522, %v520
        %v524 = vpop.permute.xlu0 %523
        %v526 = vmul.f32 %v518, %v524
        %v527 = vadd.f32 %v516, %v526
        %528 = vst [vmem:[#allocation2] sm:$0xff] %v527
        // Predicated region
        $region129: #{tpu_custom_call.1} parent=107 // pred_check
          %p529 = pneg %p477
        $region130: #{tpu_custom_call.1} parent=107 // pred_check_branch
          %531 = sbr.rel (%p529) target = $region132
        $region131: #{tpu_custom_call.1} parent=107 // pred_region
          %v532 = vld [vmem:[#allocation2] sm:$0xff]
          %v533 = vmul.f32 %v532, %v532
          %534 = vadd.xlane.f32.xlu0 %v533
          %v535 = vpop.xlane.xlu0 %534
          %v536 = vrcp.pop 128.0
          %v537 = vmul.f32 128.0, %v536
          %v538 = vsub.f32 1.0, %v537
          %v539 = vmul.f32 %v536, %v538
          %v540 = vadd.f32 %v536, %v539
          %vm541 = vweird.f32 %v536
          %v542 = vsel %vm541, %v536, %v540
          %v543 = vmul.f32 %v535, %v542
          %v544 = vadd.f32 %v543, 1e-05
          %v545 = vrsqrt.pop %v544
          %v546 = vmul.f32 %v545, %v544
          %v547 = vmul.f32 %v546, %v545
          %v548 = vmul.f32 0.5, %v547
          %v549 = vsub.f32 1.5, %v548
          %v550 = vmul.f32 %v545, %v549
          %vm551 = vweird.f32 %v544
          %vm552 = vweird.f32 %v545
          %vm553 = vmor %vm551, %vm552
          %v554 = vsel %vm553, %v545, %v550
          %v555 = vmul.f32 %v532, %v554
          %v556 = vld [vmem:[%s1] sm:$0x1]
          %v558 = vperm.slane %v556, 0
          %v560 = vmul.f32 %v555, %v558
          %561 = vst [vmem:[%s467] sm:$0xff] %v560
          %562 = vst [vmem:[%s474] sm:$0xff] %v532
        $region132: #{tpu_custom_call.1} parent=107 // pred_fallthru
          _
        %s563 = sand.u32 %s179, 1
        %s564 = scalar_lea.sflag [#allocation5], %s563
        %s565 = sand.u32 %s179, 1
        %s566 = smul.addr %s565, 8
        %s567 = scalar_lea.vmem [#allocation10], %s566
        %s568 = sand.u32 %s205, 1
        %s569 = scalar_lea.sflag [#allocation12], %s568
        %s570 = sand.u32 %s205, 1
        %s571 = smul.addr %s570, 8
        %s572 = scalar_lea.vmem [#allocation11], %s571
        // Predicated region
        $region133: #{tpu_custom_call.1} parent=107 // pred_check
          %p573 = pneg %p189
        $region134: #{tpu_custom_call.1} parent=107 // pred_check_branch
          %575 = sbr.rel (%p573) target = $region136
        $region135: #{tpu_custom_call.1} parent=107 // pred_region
          %577 = vsyncadd %s564, 0
          %s578 = smul.addr %s34, 8
          %s579 = scalar_lea.hbm %s5, %s578
          %s581 = sshll.u32 %s567, 4
          %s582 = int_to_ptr.vmem [resolvable:$true] %s581
          %s583 = sshll.u32 %s579, 4
          %s584 = int_to_ptr.hbm [resolvable:$true] %s583
          %586 = dma.vmem_to_hbm [thread:$0]  %s582, 128, %s584, %s564
        $region136: #{tpu_custom_call.1} parent=107 // pred_fallthru
          _
        // Predicated region
        $region137: #{tpu_custom_call.1} parent=107 // pred_check
          %p587 = pneg %p215
        $region138: #{tpu_custom_call.1} parent=107 // pred_check_branch
          %589 = sbr.rel (%p587) target = $region140
        $region139: #{tpu_custom_call.1} parent=107 // pred_region
          %591 = vsyncadd %s569, 0
          %s592 = smul.addr %s34, 8
          %s593 = scalar_lea.hbm %s6, %s592
          %s595 = sshll.u32 %s572, 4
          %s596 = int_to_ptr.vmem [resolvable:$true] %s595
          %s597 = sshll.u32 %s593, 4
          %s598 = int_to_ptr.hbm [resolvable:$true] %s597
          %600 = dma.vmem_to_hbm [thread:$0]  %s596, 128, %s598, %s569
        $region140: #{tpu_custom_call.1} parent=107 // pred_fallthru
          _
      $region108: #{tpu_custom_call.1} parent=5 // pred_fallthru
        _
      %p601 = scmp.le.s32.totalorder 2, %s25
      // Predicated region
      $region141: #{tpu_custom_call.1} parent=5 // pred_check
        %p602 = pneg %p601
      $region142: #{tpu_custom_call.1} parent=5 // pred_check_branch
        %604 = sbr.rel (%p602) target = $region144
      $region143: #{tpu_custom_call.1} parent=5 // pred_region
        %s605 = ssub.s32 %s25, 2
        // Predicated region
        $region145: #{tpu_custom_call.1} parent=143 // pred_check
          %p606 = pneg %p195
        $region146: #{tpu_custom_call.1} parent=143 // pred_check_branch
          %608 = sbr.rel (%p606) target = $region148
        $region147: #{tpu_custom_call.1} parent=143 // pred_region
          %s609 = sand.u32 %s180, 1
          %s610 = scalar_lea.sflag [#allocation5], %s609
          %s611 = sand.u32 %s180, 1
          %s612 = smul.addr %s611, 8
          %s613 = scalar_lea.vmem [#allocation10], %s612
          %615 = dma.done %s610, 128
        $region148: #{tpu_custom_call.1} parent=143 // pred_fallthru
          _
        // Predicated region
        $region149: #{tpu_custom_call.1} parent=143 // pred_check
          %p616 = pneg %p221
        $region150: #{tpu_custom_call.1} parent=143 // pred_check_branch
          %618 = sbr.rel (%p616) target = $region152
        $region151: #{tpu_custom_call.1} parent=143 // pred_region
          %s619 = sand.u32 %s206, 1
          %s620 = scalar_lea.sflag [#allocation12], %s619
          %s621 = sand.u32 %s206, 1
          %s622 = smul.addr %s621, 8
          %s623 = scalar_lea.vmem [#allocation11], %s622
          %625 = dma.done %s620, 128
        $region152: #{tpu_custom_call.1} parent=143 // pred_fallthru
          _
      $region144: #{tpu_custom_call.1} parent=5 // pred_fallthru
        _
    $region6: #{tpu_custom_call.1} parent=1 // loop_footer
      %s29 = sadd.s32 1, %s25
    $region7: #{tpu_custom_call.1} parent=1 // loop_footer_branch
      %24 = sbr.rel target = $region3
    $region8: #{tpu_custom_call.1} parent=1 // loop_exit
      _
    %626 = vsyncpa [#allocation4], 1
    %s627 = scalar_lea.sflag [#allocation4], 1
    %628 = vsyncpa %s627, 1
    %629 = vsyncpa [#allocation9], 1
    %s630 = scalar_lea.sflag [#allocation9], 1
    %631 = vsyncpa %s630, 1
    %632 = vsyncpa [#allocation5], 1
    %s633 = scalar_lea.sflag [#allocation5], 1
    %634 = vsyncpa %s633, 1
    %635 = vsyncpa [#allocation12], 1
    %s636 = scalar_lea.sflag [#allocation12], 1
    %637 = vsyncpa %s636, 1

</llo_original>
